<compile_context>
chip_gen: v6e
topology: v6e:2x2x1
jax: 0.10.0
libtpu: 0.0.40
codegen_flags: <defaults>
</compile_context>

<pallas_src>
import functools

import jax
import jax.numpy as jnp
from jax.experimental import pallas as pl
from jax.experimental.pallas import tpu as pltpu


_LANE = 128          # TPU lane width: batch tiles are multiples of this.
_TARGET_GRID = 4     # aim for >=4 grid steps so v7x's 2 TCs each pipeline >=2.
_W_ROWS = 120        # packed constant block is (120, 32) f32 (~15 KB).


def _round_up(x: int, m: int) -> int:
    return (x + m - 1) // m * m


def _siamese_kernel(x_ref, w_ref, o_ref, *, compute_dtype):
    """One batch tile of the full forward pass (feature-major: batch on lanes).

    x_ref : (8, T)    rows 0:4 = x1^T, rows 4:8 = x2^T
    w_ref : (120, 32) packed constants (see _pack_weights)
    o_ref : (2, T)    logits^T (lane-dense store)
    """
    cd = compute_dtype
    f32 = jnp.float32

    # Static, sublane-aligned views into the packed constant block (tiny next
    # to the batch-tile matmul work; DMA'd once thanks to the constant map).
    w1 = w_ref[0:32, 0:8].astype(cd)     # block-diagonal fc1 (both branches)
    w2 = w_ref[32:64, 0:32].astype(cd)   # block-diagonal fc2 (both branches)
    w3 = w_ref[64:80, 0:32].astype(cd)   # fc3
    w4 = w_ref[80:82, 0:16].astype(cd)   # fc4
    b = w_ref[88:120, 0:4]               # packed biases (stay f32)

    x = x_ref[...].astype(cd)
    # fc1 (both branches at once): (32,8)@(8,T) -> (32,T), bias+relu in f32.
    h1 = jnp.maximum(jnp.dot(w1, x, preferred_element_type=f32) + b[:, 0:1], 0.0)
    # fc2 (both branches): (32,32)@(32,T) -> (32,T) == cat([e1, e2], dim=1)^T.
    h2 = jnp.maximum(
        jnp.dot(w2, h1.astype(cd), preferred_element_type=f32) + b[:, 1:2], 0.0)
    # fc3 on the concatenated embedding: (16,32)@(32,T) -> (16,T), relu.
    m = jnp.maximum(
        jnp.dot(w3, h2.astype(cd), preferred_element_type=f32) + b[0:16, 2:3], 0.0)
    # fc4: (2,16)@(16,T) -> (2,T).
    z = jnp.dot(w4, m.astype(cd), preferred_element_type=f32) + b[0:2, 3:4]
    o_ref[...] = z.astype(o_ref.dtype)


def _pack_weights(params):
    """Pack all constant operands into one (120, 32) f32 block (single DMA)."""
    w1, b1, w2, b2, w3, b3, w4, b4 = [p.astype(jnp.float32) for p in params]
    wpack = jnp.zeros((_W_ROWS, 32), jnp.float32)
    # fc1 block-diagonal  (rows 0:32,  cols 0:8)
    wpack = wpack.at[0:16, 0:4].set(w1).at[16:32, 4:8].set(w1)
    # fc2 block-diagonal  (rows 32:64, cols 0:32)
    wpack = wpack.at[32:48, 0:16].set(w2).at[48:64, 16:32].set(w2)
    # fc3                 (rows 64:80, cols 0:32)
    # fc4                 (rows 80:82, cols 0:16)
    wpack = wpack.at[64:80, 0:32].set(w3).at[80:82, 0:16].set(w4)
    # packed biases       (rows 88:120, cols 0:4)
    wpack = wpack.at[88:120, 0].set(jnp.concatenate([b1, b1]))
    wpack = wpack.at[88:120, 1].set(jnp.concatenate([b2, b2]))
    wpack = wpack.at[88:104, 2].set(b3)
    wpack = wpack.at[88:90, 3].set(b4)
    return wpack


def siamese_pair_classifier(x1, x2, params, *, max_tile_b: int = 32768,
                            min_kernel_batch: int = 512, use_bf16: bool = False,
                            feature_major_output: bool = False):
    """Forward pass.  x1, x2: (B, 4) -> logits (B, 2) (or (2, B) if
    feature_major_output).  `params` are PyTorch-convention tensors:
      w1 (16,4), b1 (16,), w2 (16,16), b2 (16,), w3 (16,32), b3 (16,),
      w4 (2,16), b4 (2,).
    """
    assert x1.shape == x2.shape and x1.ndim == 2 and x1.shape[1] == 4
    B = x1.shape[0]
    f32 = jnp.float32

    # Small-batch fallback: pallas launch cost + wrapper layout passes dominate
    # tiny batches; a fused plain-XLA forward is faster there.
    if B < min_kernel_batch:
        out = _reference_forward(x1.astype(f32), x2.astype(f32), params)
        return out.T if feature_major_output else out

    wpack = _pack_weights(params)

    # Batch tiling: large lane-multiple tiles (amortize ~0.35us/step overhead)
    # while keeping >= _TARGET_GRID steps so both v7x TensorCores get work.
    tile_b = _round_up(pl.cdiv(B, _TARGET_GRID), _LANE)
    tile_b = max(_LANE, min(tile_b, _round_up(max_tile_b, _LANE)))
    b_pad = _round_up(B, tile_b)
    grid = (b_pad // tile_b,)

    # Feature-major padded input built with a single update into zeros:
    # rows 0:4 = x1^T, rows 4:8 = x2^T, batch on the lane axis.
    x_t = jax.lax.dynamic_update_slice(
        jnp.zeros((8, b_pad), f32),
        jnp.concatenate([x1.T, x2.T], axis=0).astype(f32),
        (0, 0))

    const = lambda i: (0, 0)  # constants: same block every step -> DMA'd once.
    flops = 2 * b_pad * (32 * 8 + 32 * 32 + 16 * 32 + 2 * 16)
    bytes_accessed = 4 * (b_pad * (8 + 2) + wpack.size)

    kernel = functools.partial(
        _siamese_kernel,
        compute_dtype=jnp.bfloat16 if use_bf16 else jnp.float32)

    out_t = pl.pallas_call(
        kernel,
        out_shape=jax.ShapeDtypeStruct((2, b_pad), f32),
        grid=grid,
        in_specs=[
            pl.BlockSpec((8, tile_b), lambda i: (0, i)),   # batch tile (lanes)
            pl.BlockSpec((_W_ROWS, 32), const),            # packed constants
        ],
        out_specs=pl.BlockSpec((2, tile_b), lambda i: (0, i)),  # lane-dense out
        compiler_params=pltpu.CompilerParams(
            dimension_semantics=("parallel",),        # shard batch tiles (v7x)
            vmem_limit_bytes=48 * 1024 * 1024),       # headroom on v7x 64 MiB
        cost_estimate=pl.CostEstimate(
            flops=flops, transcendentals=0, bytes_accessed=bytes_accessed),
    )(x_t, wpack)

    out_t = out_t[:, :B]
    return out_t if feature_major_output else out_t.T


def init_params(key):
    """Deterministic synthetic params in PyTorch convention:
    nn.Linear(in, out) -> weight (out, in), bias (out,)."""
    def linear(k, fan_in, fan_out):
        kw, kb = jax.random.split(k)
        bound = 1.0 / jnp.sqrt(fan_in)
        w = jax.random.uniform(kw, (fan_out, fan_in), jnp.float32, -bound, bound)
        b = jax.random.uniform(kb, (fan_out,), jnp.float32, -bound, bound)
        return w, b

    k1, k2, k3, k4 = jax.random.split(key, 4)
    w1, b1 = linear(k1, 4, 16)    # fc1
    w2, b2 = linear(k2, 16, 16)   # fc2
    w3, b3 = linear(k3, 32, 16)   # fc3 (concatenated 32-dim embedding)
    w4, b4 = linear(k4, 16, 2)    # fc4
    return (w1, b1, w2, b2, w3, b3, w4, b4)


def _reference_forward(x1, x2, params):
    """Plain-JAX reference mirroring the PyTorch forward."""
    w1, b1, w2, b2, w3, b3, w4, b4 = params

    def branch(x):
        h1 = jax.nn.relu(x @ w1.T + b1)
        h2 = jax.nn.relu(h1 @ w2.T + b2)
        return h2

    e1, e2 = branch(x1), branch(x2)
    cat = jnp.concatenate([e1, e2], axis=1)
    m = jax.nn.relu(cat @ w3.T + b3)
    return m @ w4.T + b4


if __name__ == "__main__":
    key = jax.random.PRNGKey(0)
    kx1, kx2, kp = jax.random.split(key, 3)
    params = init_params(kp)

    # 1) Small demo batch matching the module's (B, 4) inputs; force the
    #    pallas path (min_kernel_batch=0) so the kernel itself is exercised.
    B = 8
    x1 = jax.random.normal(kx1, (B, 4), jnp.float32)
    x2 = jax.random.normal(kx2, (B, 4), jnp.float32)
    logits = jax.block_until_ready(
        siamese_pair_classifier(x1, x2, params, min_kernel_batch=0))
    ref = _reference_forward(x1, x2, params)
    assert logits.shape == (B, 2)
    assert jnp.allclose(logits, ref, atol=1e-3, rtol=1e-3), "mismatch (B=8)"

    # 2) Multi-tile grid + tail padding (B not a tile multiple), kernel path.
    B2 = 640
    ky1, ky2 = jax.random.split(kx1)
    y1 = jax.random.normal(ky1, (B2, 4), jnp.float32)
    y2 = jax.random.normal(ky2, (B2, 4), jnp.float32)
    logits2 = jax.block_until_ready(siamese_pair_classifier(y1, y2, params))
    ref2 = _reference_forward(y1, y2, params)
    assert logits2.shape == (B2, 2)
    assert jnp.allclose(logits2, ref2, atol=1e-3, rtol=1e-3), "mismatch (B=640)"

    # 3) bf16 dot-input path (halves MXU pushes on v6e/v7x); looser tolerance.
    logits3 = jax.block_until_ready(
        siamese_pair_classifier(y1, y2, params, use_bf16=True))
    assert jnp.allclose(logits3, ref2, atol=5e-2, rtol=5e-2), "bf16 mismatch"

    # 4) Default small-batch fallback path (plain fused XLA).
    logits4 = jax.block_until_ready(siamese_pair_classifier(x1, x2, params))
    assert jnp.allclose(logits4, ref, atol=1e-3, rtol=1e-3), "fallback mismatch"

    print("KERNEL_OK")
</pallas_src>

<mosaic_0001>
module attributes {stable_mosaic.version = 11 : i64} {
  func.func @_siamese_kernel(%arg0: i32, %arg1: memref<8x128xf32, #tpu.memory_space<vmem>>, %arg2: memref<120x32xf32, #tpu.memory_space<vmem>>, %arg3: memref<2x128xf32, #tpu.memory_space<vmem>>) attributes {dimension_semantics = [#tpu.dimension_semantics<parallel>], iteration_bounds = array<i64: 1>, scalar_prefetch = 0 : i64, scratch_operands = 0 : i64, tpu.core_type = #tpu.core_type<tc>, window_params = [{transform_indices = @transform_0, window_bounds = array<i64: 8, 128>}, {pipeline_mode = #tpu.pipeline_mode<synchronous>, transform_indices = @transform_1, window_bounds = array<i64: 120, 32>}, {transform_indices = @transform_2, window_bounds = array<i64: 2, 128>}]} {
    %c0 = arith.constant 0 : index
    %c0_0 = arith.constant 0 : index
    %0 = vector.load %arg2[%c0, %c0_0] : memref<120x32xf32, #tpu.memory_space<vmem>>, vector<32x8xf32>
    %c32 = arith.constant 32 : index
    %c0_1 = arith.constant 0 : index
    %1 = vector.load %arg2[%c32, %c0_1] : memref<120x32xf32, #tpu.memory_space<vmem>>, vector<32x32xf32>
    %c64 = arith.constant 64 : index
    %c0_2 = arith.constant 0 : index
    %2 = vector.load %arg2[%c64, %c0_2] : memref<120x32xf32, #tpu.memory_space<vmem>>, vector<16x32xf32>
    %c80 = arith.constant 80 : index
    %c0_3 = arith.constant 0 : index
    %3 = vector.load %arg2[%c80, %c0_3] : memref<120x32xf32, #tpu.memory_space<vmem>>, vector<2x16xf32>
    %c88 = arith.constant 88 : index
    %c0_4 = arith.constant 0 : index
    %4 = vector.load %arg2[%c88, %c0_4] : memref<120x32xf32, #tpu.memory_space<vmem>>, vector<32x4xf32>
    %c0_5 = arith.constant 0 : index
    %c0_6 = arith.constant 0 : index
    %5 = vector.load %arg1[%c0_5, %c0_6] : memref<8x128xf32, #tpu.memory_space<vmem>>, vector<8x128xf32>
    %cst = arith.constant dense<0.000000e+00> : vector<32x128xf32>
    %6 = tpu.matmul %0, %5, %cst {dimension_numbers = #tpu.dot_dimension_numbers<[1], [0], [0], [1], [0, 0, 1, 1], [], []>} : vector<32x8xf32>, vector<8x128xf32>, vector<32x128xf32> -> vector<32x128xf32>
    %7 = vector.extract_strided_slice %4 {offsets = [0, 0], sizes = [32, 1], strides = [1, 1]} : vector<32x4xf32> to vector<32x1xf32>
    %8 = vector.broadcast %7 : vector<32x1xf32> to vector<32x128xf32>
    %9 = arith.addf %6, %8 : vector<32x128xf32>
    %cst_7 = arith.constant 0.000000e+00 : f32
    %10 = vector.broadcast %cst_7 : f32 to vector<32x128xf32>
    %11 = arith.maximumf %9, %10 : vector<32x128xf32>
    %cst_8 = arith.constant dense<0.000000e+00> : vector<32x128xf32>
    %12 = tpu.matmul %1, %11, %cst_8 {dimension_numbers = #tpu.dot_dimension_numbers<[1], [0], [0], [1], [0, 0, 1, 1], [], []>} : vector<32x32xf32>, vector<32x128xf32>, vector<32x128xf32> -> vector<32x128xf32>
    %13 = vector.extract_strided_slice %4 {offsets = [0, 1], sizes = [32, 1], strides = [1, 1]} : vector<32x4xf32> to vector<32x1xf32>
    %14 = vector.broadcast %13 : vector<32x1xf32> to vector<32x128xf32>
    %15 = arith.addf %12, %14 : vector<32x128xf32>
    %cst_9 = arith.constant 0.000000e+00 : f32
    %16 = vector.broadcast %cst_9 : f32 to vector<32x128xf32>
    %17 = arith.maximumf %15, %16 : vector<32x128xf32>
    %cst_10 = arith.constant dense<0.000000e+00> : vector<16x128xf32>
    %18 = tpu.matmul %2, %17, %cst_10 {dimension_numbers = #tpu.dot_dimension_numbers<[1], [0], [0], [1], [0, 0, 1, 1], [], []>} : vector<16x32xf32>, vector<32x128xf32>, vector<16x128xf32> -> vector<16x128xf32>
    %19 = vector.extract_strided_slice %4 {offsets = [0, 2], sizes = [16, 1], strides = [1, 1]} : vector<32x4xf32> to vector<16x1xf32>
    %20 = vector.broadcast %19 : vector<16x1xf32> to vector<16x128xf32>
    %21 = arith.addf %18, %20 : vector<16x128xf32>
    %cst_11 = arith.constant 0.000000e+00 : f32
    %22 = vector.broadcast %cst_11 : f32 to vector<16x128xf32>
    %23 = arith.maximumf %21, %22 : vector<16x128xf32>
    %cst_12 = arith.constant dense<0.000000e+00> : vector<2x128xf32>
    %24 = tpu.matmul %3, %23, %cst_12 {dimension_numbers = #tpu.dot_dimension_numbers<[1], [0], [0], [1], [0, 0, 1, 1], [], []>} : vector<2x16xf32>, vector<16x128xf32>, vector<2x128xf32> -> vector<2x128xf32>
    %25 = vector.extract_strided_slice %4 {offsets = [0, 3], sizes = [2, 1], strides = [1, 1]} : vector<32x4xf32> to vector<2x1xf32>
    %26 = vector.broadcast %25 : vector<2x1xf32> to vector<2x128xf32>
    %27 = arith.addf %24, %26 : vector<2x128xf32>
    %c0_13 = arith.constant 0 : index
    %c0_14 = arith.constant 0 : index
    %28 = vector.load %arg3[%c0_13, %c0_14] : memref<2x128xf32, #tpu.memory_space<vmem>>, vector<2x128xf32>
    tpu.vector_store %arg3[%c0_13, %c0_14], %27 {strides = array<i32>} : memref<2x128xf32, #tpu.memory_space<vmem>>, vector<2x128xf32>,
    return
  }
  func.func @transform_0(%arg0: i32) -> (i32, i32) {
    %c0_i32 = arith.constant 0 : i32
    %c0_i32_0 = arith.constant 0 : i32
    return %c0_i32, %arg0 : i32, i32
  }
  func.func @transform_1(%arg0: i32) -> (i32, i32) {
    %c0_i32 = arith.constant 0 : i32
    %c0_i32_0 = arith.constant 0 : i32
    %c0_i32_1 = arith.constant 0 : i32
    return %c0_i32, %c0_i32_0 : i32, i32
  }
  func.func @transform_2(%arg0: i32) -> (i32, i32) {
    %c0_i32 = arith.constant 0 : i32
    %c0_i32_0 = arith.constant 0 : i32
    return %c0_i32, %arg0 : i32, i32
  }
}

</mosaic_0001>

<llo_original>
// kernel: tpu_custom_call.1
$region0: #{tpu_custom_call.1}
  #allocation0 [shape = 'u32[]', space=smem, size = 0x4, offset = 0x4, fixed_abs, tag = 'smem constant byte address 0x4 - core index']
  #allocation1 [shape = 'u32[144,128]{1,0:T(1,128)}', space=vmem, size = 0x12000, scoped, tag = 'internal scratch']
  %s0 = inlined_call_operand.vmem [shape: f32[8,128], index: 0, kind: input, shape index: {}]
  %s1 = inlined_call_operand.vmem [shape: f32[120,32], index: 1, kind: input, shape index: {}]
  %s2 = inlined_call_operand.hbm [shape: f32[2,128], index: 2, kind: output, shape index: {}]
  %s3 = sld [smem:[#allocation0]]
  $region18: #{tpu_custom_call.1} parent=0
    _
  %s5 = ssub.s32 1, %s3
  %s6 = scalar_select 0, %s5, %s3
  $region1: #{tpu_custom_call.1} parent=0
    #allocation2 [shape = 'u8[1024]{0}', space=vmem, size = 0x400, scoped, tag = 'output window, operand 0, single buffered']
    #allocation3 [shape = 's32[1]{0}', space=sflag, size = 0x4, scoped, tag = 'scoped memory for tpu_custom_call.1']
    %7 = vsyncpa [#allocation3], 0
    // Predicated region
    $region2: #{tpu_custom_call.1} parent=1 // pred_check
      _
    $region3: #{tpu_custom_call.1} parent=1 // pred_check_branch
      %9 = sbr.rel (0) target = $region5
    $region4: #{tpu_custom_call.1} parent=1 // pred_region
      _
    $region5: #{tpu_custom_call.1} parent=1 // pred_fallthru
      _
    // Predicated region
    $region6: #{tpu_custom_call.1} parent=1 // pred_check
      _
    $region7: #{tpu_custom_call.1} parent=1 // pred_check_branch
      %11 = sbr.rel (0) target = $region9
    $region8: #{tpu_custom_call.1} parent=1 // pred_region
      _
    $region9: #{tpu_custom_call.1} parent=1 // pred_fallthru
      _
    %v12 = vld [vmem:[%s1] sm:$0xff]
    %v13 = vld [vmem:[%s1 + $0x8] sm:$0xff]
    %v14 = vld [vmem:[%s1 + $0x10] sm:$0xff]
    %v15 = vld [vmem:[%s1 + $0x18] sm:$0xff]
    %v16 = vld [vmem:[%s1 + $0x20] sm:$0xff]
    %v17 = vld [vmem:[%s1 + $0x28] sm:$0xff]
    %v18 = vld [vmem:[%s1 + $0x30] sm:$0xff]
    %v19 = vld [vmem:[%s1 + $0x38] sm:$0xff]
    %v20 = vld [vmem:[%s1 + $0x40] sm:$0xff]
    %v21 = vld [vmem:[%s1 + $0x48] sm:$0xff]
    %v22 = vld [vmem:[%s1 + $0x50] sm:$0x3]
    %v23 = vld [vmem:[%s1 + $0x58] sm:$0xff]
    %v24 = vld [vmem:[%s1 + $0x60] sm:$0xff]
    %v25 = vld [vmem:[%s1 + $0x68] sm:$0xff]
    %v26 = vld [vmem:[%s1 + $0x70] sm:$0xff]
    %v27 = vld [vmem:[%s0] sm:$0xff]
    %29 = vset.pattern.permute.xlu0 0
    %30 = vperm.xlu0 %29, %v23
    %v31 = vpop.permute.xlu0 %30
    %34 = vset.pattern.permute.xlu0 0
    %35 = vperm.xlu0 %34, %v24
    %v36 = vpop.permute.xlu0 %35
    %39 = vset.pattern.permute.xlu0 0
    %40 = vperm.xlu0 %39, %v25
    %v41 = vpop.permute.xlu0 %40
    %44 = vset.pattern.permute.xlu0 0
    %45 = vperm.xlu0 %44, %v26
    %v46 = vpop.permute.xlu0 %45
    %vm48 = vcmask 64512
    %v50 = vsel %vm48, %v12, 0
    %v53 = vsel %vm48, %v13, 0
    %v56 = vsel %vm48, %v14, 0
    %v59 = vsel %vm48, %v15, 0
    %61 = vmatprep.subr.mxu0 0.0
    %62 = vmatpush1.msra.mxu0 0.0
    %63 = vmatprep.subr.mxu0 0.0
    %64 = vmatpush1.msra.mxu0 0.0
    %65 = vmatprep.subr.mxu0 0.0
    %66 = vmatpush1.msra.mxu0 0.0
    %67 = vmatprep.subr.mxu0 0.0
    %68 = vmatpush1.msra.mxu0 0.0
    %69 = vmatprep.subr.mxu0 0.0
    %70 = vmatpush1.msra.mxu0 0.0
    %71 = vmatprep.subr.mxu0 0.0
    %72 = vmatpush1.msra.mxu0 0.0
    %73 = vmatprep.subr.mxu0 0.0
    %74 = vmatpush1.msra.mxu0 0.0
    %75 = vmatprep.subr.mxu0 0.0
    %76 = vmatpush1.msra.mxu0 0.0
    %77 = vmatprep.subr.mxu0 0.0
    %78 = vmatpush1.msra.mxu0 0.0
    %79 = vmatprep.subr.mxu0 0.0
    %80 = vmatpush1.msra.mxu0 0.0
    %81 = vmatprep.subr.mxu0 0.0
    %82 = vmatpush1.msra.mxu0 0.0
    %83 = vmatprep.subr.mxu0 0.0
    %84 = vmatpush1.msra.mxu0 0.0
    %85 = vmatprep.subr.mxu0 0.0
    %86 = vmatpush1.msra.mxu0 0.0
    %87 = vmatprep.subr.mxu0 0.0
    %88 = vmatpush1.msra.mxu0 0.0
    %89 = vmatprep.subr.mxu0 0.0
    %90 = vmatpush1.msra.mxu0 0.0
    %91 = vmatprep.subr.mxu0 0.0
    %92 = vmatpush1.msra.mxu0 %v27
    %93 = vmatprep.subr.mxu0 0.0
    %94 = vmatpush2.msra.mxu0 0.0
    %95 = vmatprep.subr.mxu0 0.0
    %96 = vmatpush2.msra.mxu0 0.0
    %97 = vmatprep.subr.mxu0 0.0
    %98 = vmatpush2.msra.mxu0 0.0
    %99 = vmatprep.subr.mxu0 0.0
    %100 = vmatpush2.msra.mxu0 0.0
    %101 = vmatprep.subr.mxu0 0.0
    %102 = vmatpush2.msra.mxu0 0.0
    %103 = vmatprep.subr.mxu0 0.0
    %104 = vmatpush2.msra.mxu0 0.0
    %105 = vmatprep.subr.mxu0 0.0
    %106 = vmatpush2.msra.mxu0 0.0
    %107 = vmatprep.subr.mxu0 0.0
    %108 = vmatpush2.msra.mxu0 0.0
    %109 = vmatprep.subr.mxu0 0.0
    %110 = vmatpush2.msra.mxu0 0.0
    %111 = vmatprep.subr.mxu0 0.0
    %112 = vmatpush2.msra.mxu0 0.0
    %113 = vmatprep.subr.mxu0 0.0
    %114 = vmatpush2.msra.mxu0 0.0
    %115 = vmatprep.subr.mxu0 0.0
    %116 = vmatpush2.msra.mxu0 0.0
    %117 = vmatprep.subr.mxu0 0.0
    %118 = vmatpush2.msra.mxu0 0.0
    %119 = vmatprep.subr.mxu0 0.0
    %120 = vmatpush2.msra.mxu0 0.0
    %121 = vmatprep.subr.mxu0 0.0
    %122 = vmatpush2.msra.mxu0 0.0
    %123 = vmatprep.subr.mxu0 0.0
    %124 = vmatpush2.msra.mxu0 0.0
    %125 = vmatprep.mubr.f32.mxu0 0.0
    %126 = vmatmul.mubr.f32.gmra.mxu0 %v50
    %v127 = vpop.f32.mrf.mxu0
    %v128 = vadd.f32 %v31, %v127
    %v129 = vpop.f32.mrf.mxu0
    %130 = vmatprep.mubr.f32.mxu0 0.0
    %131 = vmatmul.mubr.f32.gmra.mxu0 %v53
    %v132 = vpop.f32.mrf.mxu0
    %v133 = vadd.f32 %v36, %v132
    %v134 = vpop.f32.mrf.mxu0
    %135 = vmatprep.mubr.f32.mxu0 0.0
    %136 = vmatmul.mubr.f32.gmra.mxu0 %v56
    %v137 = vpop.f32.mrf.mxu0
    %v138 = vadd.f32 %v41, %v137
    %v139 = vpop.f32.mrf.mxu0
    %140 = vmatprep.mubr.f32.mxu0 0.0
    %141 = vmatmul.mubr.f32.gmra.mxu0 %v59
    %v142 = vpop.f32.mrf.mxu0
    %v143 = vadd.f32 %v46, %v142
    %v144 = vpop.f32.mrf.mxu0
    %145 = vdwg.mxu0
    %v146 = vmax.f32 %v128, 0.0
    %v147 = vmax.f32 %v133, 0.0
    %v148 = vmax.f32 %v138, 0.0
    %v149 = vmax.f32 %v143, 0.0
    %150 = vset.pattern.permute.xlu0 1
    %151 = vperm.xlu0 %150, %v23
    %v152 = vpop.permute.xlu0 %151
    %154 = vset.pattern.permute.xlu0 1
    %155 = vperm.xlu0 %154, %v24
    %v156 = vpop.permute.xlu0 %155
    %158 = vset.pattern.permute.xlu0 1
    %159 = vperm.xlu0 %158, %v25
    %v160 = vpop.permute.xlu0 %159
    %162 = vset.pattern.permute.xlu0 1
    %163 = vperm.xlu0 %162, %v26
    %v164 = vpop.permute.xlu0 %163
    %vm166 = vcmask 261120
    %v168 = vsel %vm166, %v16, 0
    %v171 = vsel %vm166, %v17, 0
    %v174 = vsel %vm166, %v18, 0
    %v177 = vsel %vm166, %v19, 0
    %179 = vmatprep.subr.mxu0 0.0
    %180 = vmatpush1.msra.mxu0 0.0
    %181 = vmatprep.subr.mxu0 0.0
    %182 = vmatpush1.msra.mxu0 0.0
    %183 = vmatprep.subr.mxu0 0.0
    %184 = vmatpush1.msra.mxu0 0.0
    %185 = vmatprep.subr.mxu0 0.0
    %186 = vmatpush1.msra.mxu0 0.0
    %187 = vmatprep.subr.mxu0 0.0
    %188 = vmatpush1.msra.mxu0 0.0
    %189 = vmatprep.subr.mxu0 0.0
    %190 = vmatpush1.msra.mxu0 0.0
    %191 = vmatprep.subr.mxu0 0.0
    %192 = vmatpush1.msra.mxu0 0.0
    %193 = vmatprep.subr.mxu0 0.0
    %194 = vmatpush1.msra.mxu0 0.0
    %195 = vmatprep.subr.mxu0 0.0
    %196 = vmatpush1.msra.mxu0 0.0
    %197 = vmatprep.subr.mxu0 0.0
    %198 = vmatpush1.msra.mxu0 0.0
    %199 = vmatprep.subr.mxu0 0.0
    %200 = vmatpush1.msra.mxu0 0.0
    %201 = vmatprep.subr.mxu0 0.0
    %202 = vmatpush1.msra.mxu0 0.0
    %203 = vmatprep.subr.mxu0 0.0
    %204 = vmatpush1.msra.mxu0 %v149
    %205 = vmatprep.subr.mxu0 0.0
    %206 = vmatpush1.msra.mxu0 %v148
    %207 = vmatprep.subr.mxu0 0.0
    %208 = vmatpush1.msra.mxu0 %v147
    %209 = vmatprep.subr.mxu0 0.0
    %210 = vmatpush1.msra.mxu0 %v146
    %211 = vmatprep.subr.mxu0 0.0
    %212 = vmatpush2.msra.mxu0 0.0
    %213 = vmatprep.subr.mxu0 0.0
    %214 = vmatpush2.msra.mxu0 0.0
    %215 = vmatprep.subr.mxu0 0.0
    %216 = vmatpush2.msra.mxu0 0.0
    %217 = vmatprep.subr.mxu0 0.0
    %218 = vmatpush2.msra.mxu0 0.0
    %219 = vmatprep.subr.mxu0 0.0
    %220 = vmatpush2.msra.mxu0 0.0
    %221 = vmatprep.subr.mxu0 0.0
    %222 = vmatpush2.msra.mxu0 0.0
    %223 = vmatprep.subr.mxu0 0.0
    %224 = vmatpush2.msra.mxu0 0.0
    %225 = vmatprep.subr.mxu0 0.0
    %226 = vmatpush2.msra.mxu0 0.0
    %227 = vmatprep.subr.mxu0 0.0
    %228 = vmatpush2.msra.mxu0 0.0
    %229 = vmatprep.subr.mxu0 0.0
    %230 = vmatpush2.msra.mxu0 0.0
    %231 = vmatprep.subr.mxu0 0.0
    %232 = vmatpush2.msra.mxu0 0.0
    %233 = vmatprep.subr.mxu0 0.0
    %234 = vmatpush2.msra.mxu0 0.0
    %235 = vmatprep.subr.mxu0 0.0
    %236 = vmatpush2.msra.mxu0 0.0
    %237 = vmatprep.subr.mxu0 0.0
    %238 = vmatpush2.msra.mxu0 0.0
    %239 = vmatprep.subr.mxu0 0.0
    %240 = vmatpush2.msra.mxu0 0.0
    %241 = vmatprep.subr.mxu0 0.0
    %242 = vmatpush2.msra.mxu0 0.0
    %243 = vmatprep.mubr.f32.mxu0 0.0
    %244 = vmatmul.mubr.f32.gmra.mxu0 %v168
    %v245 = vpop.f32.mrf.mxu0
    %v246 = vadd.f32 %v152, %v245
    %v247 = vpop.f32.mrf.mxu0
    %248 = vmatprep.mubr.f32.mxu0 0.0
    %249 = vmatmul.mubr.f32.gmra.mxu0 %v171
    %v250 = vpop.f32.mrf.mxu0
    %v251 = vadd.f32 %v156, %v250
    %v252 = vpop.f32.mrf.mxu0
    %253 = vmatprep.mubr.f32.mxu0 0.0
    %254 = vmatmul.mubr.f32.gmra.mxu0 %v174
    %v255 = vpop.f32.mrf.mxu0
    %v256 = vadd.f32 %v160, %v255
    %v257 = vpop.f32.mrf.mxu0
    %258 = vmatprep.mubr.f32.mxu0 0.0
    %259 = vmatmul.mubr.f32.gmra.mxu0 %v177
    %v260 = vpop.f32.mrf.mxu0
    %v261 = vadd.f32 %v164, %v260
    %v262 = vpop.f32.mrf.mxu0
    %263 = vdwg.mxu0
    %v264 = vmax.f32 %v246, 0.0
    %v265 = vmax.f32 %v251, 0.0
    %v266 = vmax.f32 %v256, 0.0
    %v267 = vmax.f32 %v261, 0.0
    %268 = vset.pattern.permute.xlu0 2
    %269 = vperm.xlu0 %268, %v23
    %v270 = vpop.permute.xlu0 %269
    %272 = vset.pattern.permute.xlu0 2
    %273 = vperm.xlu0 %272, %v24
    %v274 = vpop.permute.xlu0 %273
    %v277 = vsel %vm166, %v20, 0
    %v280 = vsel %vm166, %v21, 0
    %282 = vmatprep.subr.mxu0 0.0
    %283 = vmatpush1.msra.mxu0 0.0
    %284 = vmatprep.subr.mxu0 0.0
    %285 = vmatpush1.msra.mxu0 0.0
    %286 = vmatprep.subr.mxu0 0.0
    %287 = vmatpush1.msra.mxu0 0.0
    %288 = vmatprep.subr.mxu0 0.0
    %289 = vmatpush1.msra.mxu0 0.0
    %290 = vmatprep.subr.mxu0 0.0
    %291 = vmatpush1.msra.mxu0 0.0
    %292 = vmatprep.subr.mxu0 0.0
    %293 = vmatpush1.msra.mxu0 0.0
    %294 = vmatprep.subr.mxu0 0.0
    %295 = vmatpush1.msra.mxu0 0.0
    %296 = vmatprep.subr.mxu0 0.0
    %297 = vmatpush1.msra.mxu0 0.0
    %298 = vmatprep.subr.mxu0 0.0
    %299 = vmatpush1.msra.mxu0 0.0
    %300 = vmatprep.subr.mxu0 0.0
    %301 = vmatpush1.msra.mxu0 0.0
    %302 = vmatprep.subr.mxu0 0.0
    %303 = vmatpush1.msra.mxu0 0.0
    %304 = vmatprep.subr.mxu0 0.0
    %305 = vmatpush1.msra.mxu0 0.0
    %306 = vmatprep.subr.mxu0 0.0
    %307 = vmatpush1.msra.mxu0 %v267
    %308 = vmatprep.subr.mxu0 0.0
    %309 = vmatpush1.msra.mxu0 %v266
    %310 = vmatprep.subr.mxu0 0.0
    %311 = vmatpush1.msra.mxu0 %v265
    %312 = vmatprep.subr.mxu0 0.0
    %313 = vmatpush1.msra.mxu0 %v264
    %314 = vmatprep.subr.mxu0 0.0
    %315 = vmatpush2.msra.mxu0 0.0
    %316 = vmatprep.subr.mxu0 0.0
    %317 = vmatpush2.msra.mxu0 0.0
    %318 = vmatprep.subr.mxu0 0.0
    %319 = vmatpush2.msra.mxu0 0.0
    %320 = vmatprep.subr.mxu0 0.0
    %321 = vmatpush2.msra.mxu0 0.0
    %322 = vmatprep.subr.mxu0 0.0
    %323 = vmatpush2.msra.mxu0 0.0
    %324 = vmatprep.subr.mxu0 0.0
    %325 = vmatpush2.msra.mxu0 0.0
    %326 = vmatprep.subr.mxu0 0.0
    %327 = vmatpush2.msra.mxu0 0.0
    %328 = vmatprep.subr.mxu0 0.0
    %329 = vmatpush2.msra.mxu0 0.0
    %330 = vmatprep.subr.mxu0 0.0
    %331 = vmatpush2.msra.mxu0 0.0
    %332 = vmatprep.subr.mxu0 0.0
    %333 = vmatpush2.msra.mxu0 0.0
    %334 = vmatprep.subr.mxu0 0.0
    %335 = vmatpush2.msra.mxu0 0.0
    %336 = vmatprep.subr.mxu0 0.0
    %337 = vmatpush2.msra.mxu0 0.0
    %338 = vmatprep.subr.mxu0 0.0
    %339 = vmatpush2.msra.mxu0 0.0
    %340 = vmatprep.subr.mxu0 0.0
    %341 = vmatpush2.msra.mxu0 0.0
    %342 = vmatprep.subr.mxu0 0.0
    %343 = vmatpush2.msra.mxu0 0.0
    %344 = vmatprep.subr.mxu0 0.0
    %345 = vmatpush2.msra.mxu0 0.0
    %346 = vmatprep.mubr.f32.mxu0 0.0
    %347 = vmatmul.mubr.f32.gmra.mxu0 %v277
    %v348 = vpop.f32.mrf.mxu0
    %v349 = vadd.f32 %v270, %v348
    %v350 = vpop.f32.mrf.mxu0
    %351 = vmatprep.mubr.f32.mxu0 0.0
    %352 = vmatmul.mubr.f32.gmra.mxu0 %v280
    %v353 = vpop.f32.mrf.mxu0
    %v354 = vadd.f32 %v274, %v353
    %v355 = vpop.f32.mrf.mxu0
    %356 = vdwg.mxu0
    %v357 = vmax.f32 %v349, 0.0
    %v358 = vmax.f32 %v354, 0.0
    %359 = vset.pattern.permute.xlu0 3
    %360 = vperm.xlu0 %359, %v23
    %v361 = vpop.permute.xlu0 %360
    %vm363 = vcmask 130048
    %v365 = vsel %vm363, %v22, 0
    %367 = vmatprep.subr.mxu0 0.0
    %368 = vmatpush1.msra.mxu0 0.0
    %369 = vmatprep.subr.mxu0 0.0
    %370 = vmatpush1.msra.mxu0 0.0
    %371 = vmatprep.subr.mxu0 0.0
    %372 = vmatpush1.msra.mxu0 0.0
    %373 = vmatprep.subr.mxu0 0.0
    %374 = vmatpush1.msra.mxu0 0.0
    %375 = vmatprep.subr.mxu0 0.0
    %376 = vmatpush1.msra.mxu0 0.0
    %377 = vmatprep.subr.mxu0 0.0
    %378 = vmatpush1.msra.mxu0 0.0
    %379 = vmatprep.subr.mxu0 0.0
    %380 = vmatpush1.msra.mxu0 0.0
    %381 = vmatprep.subr.mxu0 0.0
    %382 = vmatpush1.msra.mxu0 0.0
    %383 = vmatprep.subr.mxu0 0.0
    %384 = vmatpush1.msra.mxu0 0.0
    %385 = vmatprep.subr.mxu0 0.0
    %386 = vmatpush1.msra.mxu0 0.0
    %387 = vmatprep.subr.mxu0 0.0
    %388 = vmatpush1.msra.mxu0 0.0
    %389 = vmatprep.subr.mxu0 0.0
    %390 = vmatpush1.msra.mxu0 0.0
    %391 = vmatprep.subr.mxu0 0.0
    %392 = vmatpush1.msra.mxu0 0.0
    %393 = vmatprep.subr.mxu0 0.0
    %394 = vmatpush1.msra.mxu0 0.0
    %395 = vmatprep.subr.mxu0 0.0
    %396 = vmatpush1.msra.mxu0 %v358
    %397 = vmatprep.subr.mxu0 0.0
    %398 = vmatpush1.msra.mxu0 %v357
    %399 = vmatprep.subr.mxu0 0.0
    %400 = vmatpush2.msra.mxu0 0.0
    %401 = vmatprep.subr.mxu0 0.0
    %402 = vmatpush2.msra.mxu0 0.0
    %403 = vmatprep.subr.mxu0 0.0
    %404 = vmatpush2.msra.mxu0 0.0
    %405 = vmatprep.subr.mxu0 0.0
    %406 = vmatpush2.msra.mxu0 0.0
    %407 = vmatprep.subr.mxu0 0.0
    %408 = vmatpush2.msra.mxu0 0.0
    %409 = vmatprep.subr.mxu0 0.0
    %410 = vmatpush2.msra.mxu0 0.0
    %411 = vmatprep.subr.mxu0 0.0
    %412 = vmatpush2.msra.mxu0 0.0
    %413 = vmatprep.subr.mxu0 0.0
    %414 = vmatpush2.msra.mxu0 0.0
    %415 = vmatprep.subr.mxu0 0.0
    %416 = vmatpush2.msra.mxu0 0.0
    %417 = vmatprep.subr.mxu0 0.0
    %418 = vmatpush2.msra.mxu0 0.0
    %419 = vmatprep.subr.mxu0 0.0
    %420 = vmatpush2.msra.mxu0 0.0
    %421 = vmatprep.subr.mxu0 0.0
    %422 = vmatpush2.msra.mxu0 0.0
    %423 = vmatprep.subr.mxu0 0.0
    %424 = vmatpush2.msra.mxu0 0.0
    %425 = vmatprep.subr.mxu0 0.0
    %426 = vmatpush2.msra.mxu0 0.0
    %427 = vmatprep.subr.mxu0 0.0
    %428 = vmatpush2.msra.mxu0 0.0
    %429 = vmatprep.subr.mxu0 0.0
    %430 = vmatpush2.msra.mxu0 0.0
    %431 = vmatprep.mubr.f32.mxu0 0.0
    %432 = vmatmul.mubr.f32.gmra.mxu0 %v365
    %v433 = vpop.f32.mrf.mxu0
    %v434 = vadd.f32 %v361, %v433
    %v435 = vpop.f32.mrf.mxu0
    %436 = vdwg.mxu0
    %437 = vst [vmem:[#allocation2] sm:$0x3] %v434
    // Predicated region
    $region10: #{tpu_custom_call.1} parent=1 // pred_check
      _
    $region11: #{tpu_custom_call.1} parent=1 // pred_check_branch
      %439 = sbr.rel (0) target = $region13
    $region12: #{tpu_custom_call.1} parent=1 // pred_region
      %s441 = ssub.s32 32, 32
      %442 = vsyncadd [#allocation3], %s441
      %s444 = sshll.u32 [#allocation2], 4
      %s445 = int_to_ptr.vmem [resolvable:$true] %s444
      %447 = dma.vmem_to_hbm [thread:$0]  %s445, 32, %s2, [#allocation3]
    $region13: #{tpu_custom_call.1} parent=1 // pred_fallthru
      _
    // Predicated region
    $region14: #{tpu_custom_call.1} parent=1 // pred_check
      _
    $region15: #{tpu_custom_call.1} parent=1 // pred_check_branch
      %449 = sbr.rel (0) target = $region17
    $region16: #{tpu_custom_call.1} parent=1 // pred_region
      %450 = dma.done [#allocation3], 32
    $region17: #{tpu_custom_call.1} parent=1 // pred_fallthru
      _
    %451 = vsyncpa [#allocation3], 1

</llo_original>
